<compile_context>
chip_gen: v5e
topology: v5e:2x2
jax: 0.10.0
libtpu: 0.0.40
codegen_flags: <defaults>
</compile_context>

<pallas_src>
import jax
import jax.numpy as jnp
from jax.experimental import pallas as pl
from jax.experimental.pallas import tpu as pltpu

INPUT_SIZE = 1539
HIDDEN = 128
NUM_CLASSES = 11

K_PAD = 1792   # 7 * 256: lane- and MXU-aligned contraction dim (zeros in the tail)
N_PAD = 128    # lane-dense output block; real logits are columns [:11]


def _round_up(x, m):
    return (x + m - 1) // m * m


def _mlp_kernel(x_ref, w1_ref, b1_ref, w2_ref, b2_ref, o_ref):
    # Layer 1: bf16 x @ bf16 W1 on the MXU, f32 accumulation; bias + ReLU on the VPU.
    h = jnp.dot(x_ref[...], w1_ref[...], preferred_element_type=jnp.float32)
    h = jnp.maximum(h + b1_ref[...], 0.0)
    # Layer 2 (tiny, 128x128): keep f32 operands for accuracy.
    out = jnp.dot(h, w2_ref[...], preferred_element_type=jnp.float32)
    o_ref[...] = (out + b2_ref[...]).astype(o_ref.dtype)


def prepare_params(w1, b1, w2, b2):
    """One-time (model-load) preprocessing from PyTorch nn.Linear layout:
    transpose to (in, out), zero-pad ragged dims to aligned sizes, cast W1 to bf16."""
    w1_t = jnp.zeros((K_PAD, HIDDEN), jnp.bfloat16)
    w1_t = w1_t.at[:INPUT_SIZE, :].set(w1.T.astype(jnp.bfloat16))
    b1_r = b1.reshape(1, HIDDEN).astype(jnp.float32)
    w2_t = jnp.zeros((HIDDEN, N_PAD), jnp.float32)
    w2_t = w2_t.at[:, :NUM_CLASSES].set(w2.T.astype(jnp.float32))
    b2_r = jnp.zeros((1, N_PAD), jnp.float32)
    b2_r = b2_r.at[:, :NUM_CLASSES].set(b2.astype(jnp.float32))
    return jax.device_put((w1_t, b1_r, w2_t, b2_r))


@jax.jit
def chatbot_model_forward(x, params):
    """x: (B, INPUT_SIZE) f32.  params: output of prepare_params()."""
    w1_t, b1_r, w2_t, b2_r = params
    B = x.shape[0]

    # Batch tiling: small batches run as a single (8-row-aligned) tile; large batches
    # split into 256-row tiles so W1 stays VMEM-resident across the grid and x DMA
    # pipelines against MXU work.  A 256x1792 bf16 x tile (~0.9 MiB, double-buffered)
    # is well inside even v7x's 32 MiB scoped-VMEM default.
    tile_b = min(256, _round_up(max(B, 1), 8))
    b_pad = _round_up(B, tile_b)

    # Zero-pad batch and contraction dims; cast activations to bf16 (fused by XLA
    # into one pad+convert alongside the pallas_call, no extra HBM round trip of note).
    x_p = jnp.zeros((b_pad, K_PAD), jnp.bfloat16)
    x_p = x_p.at[:B, :INPUT_SIZE].set(x.astype(jnp.bfloat16))

    flops = 2 * b_pad * (K_PAD * HIDDEN + HIDDEN * N_PAD)
    bytes_accessed = (x_p.size * 2 + w1_t.size * 2
                      + (b1_r.size + w2_t.size + b2_r.size) * 4
                      + b_pad * N_PAD * 4)

    out = pl.pallas_call(
        _mlp_kernel,
        out_shape=jax.ShapeDtypeStruct((b_pad, N_PAD), jnp.float32),
        grid=(b_pad // tile_b,),
        in_specs=[
            pl.BlockSpec((tile_b, K_PAD), lambda i: (i, 0)),   # x: tiled over batch
            pl.BlockSpec((K_PAD, HIDDEN), lambda i: (0, 0)),   # W1: VMEM-resident
            pl.BlockSpec((1, HIDDEN), lambda i: (0, 0)),       # b1: resident
            pl.BlockSpec((HIDDEN, N_PAD), lambda i: (0, 0)),   # W2: resident
            pl.BlockSpec((1, N_PAD), lambda i: (0, 0)),        # b2: resident
        ],
        out_specs=pl.BlockSpec((tile_b, N_PAD), lambda i: (i, 0)),
        compiler_params=pltpu.CompilerParams(
            dimension_semantics=("parallel",),
        ),
        cost_estimate=pl.CostEstimate(
            flops=flops, transcendentals=0, bytes_accessed=bytes_accessed),
    )(x_p, w1_t, b1_r, w2_t, b2_r)

    return out[:B, :NUM_CLASSES]


def _init_linear(key, out_features, in_features):
    """Deterministic init mimicking PyTorch nn.Linear default (U[-k, k], k=1/sqrt(fan_in))."""
    kw, kb = jax.random.split(key)
    bound = 1.0 / (in_features ** 0.5)
    w = jax.random.uniform(kw, (out_features, in_features), jnp.float32, -bound, bound)
    b = jax.random.uniform(kb, (out_features,), jnp.float32, -bound, bound)
    return w, b


if __name__ == "__main__":
    root = jax.random.PRNGKey(0)
    k_x, k_fc, k_out = jax.random.split(root, 3)

    B = 8
    x = jax.random.normal(k_x, (B, INPUT_SIZE), jnp.float32)

    w1, b1 = _init_linear(k_fc, HIDDEN, INPUT_SIZE)       # self.fc
    w2, b2 = _init_linear(k_out, NUM_CLASSES, HIDDEN)     # self.output

    params = prepare_params(w1, b1, w2, b2)               # one-time, not per-call
    y = chatbot_model_forward(x, params)
    y = jax.block_until_ready(y)

    # f32 reference (exact PyTorch-forward math).  The kernel uses bf16 operands for
    # the first matmul (f32 accumulation), so tolerance is relaxed accordingly.
    h_ref = jnp.maximum(x @ w1.T + b1, 0.0)
    y_ref = h_ref @ w2.T + b2

    assert y.shape == (B, NUM_CLASSES)
    assert jnp.allclose(y, y_ref, atol=2e-2, rtol=2e-2), (
        f"max abs err {jnp.max(jnp.abs(y - y_ref))}")

    print("KERNEL_OK")
</pallas_src>

<mosaic_0001>
module attributes {stable_mosaic.version = 11 : i64} {
  func.func @_mlp_kernel(%arg0: i32, %arg1: memref<8x1792xbf16, #tpu.memory_space<vmem>>, %arg2: memref<1792x128xbf16, #tpu.memory_space<vmem>>, %arg3: memref<1x128xf32, #tpu.memory_space<vmem>>, %arg4: memref<128x128xf32, #tpu.memory_space<vmem>>, %arg5: memref<1x128xf32, #tpu.memory_space<vmem>>, %arg6: memref<8x128xf32, #tpu.memory_space<vmem>>) attributes {dimension_semantics = [#tpu.dimension_semantics<parallel>], iteration_bounds = array<i64: 1>, scalar_prefetch = 0 : i64, scratch_operands = 0 : i64, tpu.core_type = #tpu.core_type<tc>, window_params = [{transform_indices = @transform_0, window_bounds = array<i64: 8, 1792>}, {pipeline_mode = #tpu.pipeline_mode<synchronous>, transform_indices = @transform_1, window_bounds = array<i64: 1792, 128>}, {pipeline_mode = #tpu.pipeline_mode<synchronous>, transform_indices = @transform_2, window_bounds = array<i64: 1, 128>}, {pipeline_mode = #tpu.pipeline_mode<synchronous>, transform_indices = @transform_3, window_bounds = array<i64: 128, 128>}, {pipeline_mode = #tpu.pipeline_mode<synchronous>, transform_indices = @transform_4, window_bounds = array<i64: 1, 128>}, {transform_indices = @transform_5, window_bounds = array<i64: 8, 128>}]} {
    %c0 = arith.constant 0 : index
    %c0_0 = arith.constant 0 : index
    %0 = vector.load %arg1[%c0, %c0_0] : memref<8x1792xbf16, #tpu.memory_space<vmem>>, vector<8x1792xbf16>
    %c0_1 = arith.constant 0 : index
    %c0_2 = arith.constant 0 : index
    %1 = vector.load %arg2[%c0_1, %c0_2] : memref<1792x128xbf16, #tpu.memory_space<vmem>>, vector<1792x128xbf16>
    %cst = arith.constant dense<0.000000e+00> : vector<8x128xf32>
    %2 = tpu.matmul %0, %1, %cst {dimension_numbers = #tpu.dot_dimension_numbers<[1], [0], [0], [1], [0, 0, 1, 1], [], []>} : vector<8x1792xbf16>, vector<1792x128xbf16>, vector<8x128xf32> -> vector<8x128xf32>
    %c0_3 = arith.constant 0 : index
    %c0_4 = arith.constant 0 : index
    %3 = vector.load %arg3[%c0_3, %c0_4] : memref<1x128xf32, #tpu.memory_space<vmem>>, vector<1x128xf32>
    %4 = vector.broadcast %3 : vector<1x128xf32> to vector<8x128xf32>
    %5 = arith.addf %2, %4 : vector<8x128xf32>
    %cst_5 = arith.constant 0.000000e+00 : f32
    %6 = vector.broadcast %cst_5 : f32 to vector<8x128xf32>
    %7 = arith.maximumf %5, %6 : vector<8x128xf32>
    %c0_6 = arith.constant 0 : index
    %c0_7 = arith.constant 0 : index
    %8 = vector.load %arg4[%c0_6, %c0_7] : memref<128x128xf32, #tpu.memory_space<vmem>>, vector<128x128xf32>
    %cst_8 = arith.constant dense<0.000000e+00> : vector<8x128xf32>
    %9 = tpu.matmul %7, %8, %cst_8 {dimension_numbers = #tpu.dot_dimension_numbers<[1], [0], [0], [1], [0, 0, 1, 1], [], []>} : vector<8x128xf32>, vector<128x128xf32>, vector<8x128xf32> -> vector<8x128xf32>
    %c0_9 = arith.constant 0 : index
    %c0_10 = arith.constant 0 : index
    %10 = vector.load %arg5[%c0_9, %c0_10] : memref<1x128xf32, #tpu.memory_space<vmem>>, vector<1x128xf32>
    %11 = vector.broadcast %10 : vector<1x128xf32> to vector<8x128xf32>
    %12 = arith.addf %9, %11 : vector<8x128xf32>
    %c0_11 = arith.constant 0 : index
    %c0_12 = arith.constant 0 : index
    %13 = vector.load %arg6[%c0_11, %c0_12] : memref<8x128xf32, #tpu.memory_space<vmem>>, vector<8x128xf32>
    tpu.vector_store %arg6[%c0_11, %c0_12], %12 {strides = array<i32>} : memref<8x128xf32, #tpu.memory_space<vmem>>, vector<8x128xf32>,
    return
  }
  func.func @transform_0(%arg0: i32) -> (i32, i32) {
    %c0_i32 = arith.constant 0 : i32
    %c0_i32_0 = arith.constant 0 : i32
    return %arg0, %c0_i32 : i32, i32
  }
  func.func @transform_1(%arg0: i32) -> (i32, i32) {
    %c0_i32 = arith.constant 0 : i32
    %c0_i32_0 = arith.constant 0 : i32
    %c0_i32_1 = arith.constant 0 : i32
    return %c0_i32, %c0_i32_0 : i32, i32
  }
  func.func @transform_2(%arg0: i32) -> (i32, i32) {
    %c0_i32 = arith.constant 0 : i32
    %c0_i32_0 = arith.constant 0 : i32
    %c0_i32_1 = arith.constant 0 : i32
    return %c0_i32, %c0_i32_0 : i32, i32
  }
  func.func @transform_3(%arg0: i32) -> (i32, i32) {
    %c0_i32 = arith.constant 0 : i32
    %c0_i32_0 = arith.constant 0 : i32
    %c0_i32_1 = arith.constant 0 : i32
    return %c0_i32, %c0_i32_0 : i32, i32
  }
  func.func @transform_4(%arg0: i32) -> (i32, i32) {
    %c0_i32 = arith.constant 0 : i32
    %c0_i32_0 = arith.constant 0 : i32
    %c0_i32_1 = arith.constant 0 : i32
    return %c0_i32, %c0_i32_0 : i32, i32
  }
  func.func @transform_5(%arg0: i32) -> (i32, i32) {
    %c0_i32 = arith.constant 0 : i32
    %c0_i32_0 = arith.constant 0 : i32
    return %arg0, %c0_i32 : i32, i32
  }
}

</mosaic_0001>

<llo_original>
// kernel: chatbot_model_forward.1
$region0: #{chatbot_model_forward.1}
  #allocation0 [shape = 'u32[]', space=smem, size = 0x4, offset = 0x4, fixed_abs, tag = 'smem constant byte address 0x4 - core index']
  #allocation1 [shape = 'u32[72,128]{1,0:T(1,128)}', space=vmem, size = 0x9000, scoped, tag = 'internal scratch']
  %s0 = inlined_call_operand.vmem [shape: bf16[8,1792], index: 0, kind: input, shape index: {}]
  %s1 = inlined_call_operand.hbm [shape: bf16[1792,128], index: 1, kind: input, shape index: {}]
  %s2 = inlined_call_operand.vmem [shape: f32[1,128], index: 2, kind: input, shape index: {}]
  %s3 = inlined_call_operand.vmem [shape: f32[128,128], index: 3, kind: input, shape index: {}]
  %s4 = inlined_call_operand.vmem [shape: f32[1,128], index: 4, kind: input, shape index: {}]
  %s5 = inlined_call_operand.hbm [shape: f32[8,128], index: 5, kind: output, shape index: {}]
  %s6 = sld [smem:[#allocation0]]
  $region34: #{chatbot_model_forward.1} parent=0
    _
  %s8 = ssub.s32 1, %s6
  %s9 = scalar_select 0, %s8, %s6
  $region1: #{chatbot_model_forward.1} parent=0
    #allocation2 [shape = 'u8[458752]{0}', space=vmem, size = 0x70000, scoped, tag = 'input window, operand 1, single buffered']
    #allocation3 [shape = 's32[1]{0}', space=sflag, size = 0x4, scoped, tag = 'scoped memory for chatbot_model_forward.1']
    #allocation4 [shape = 's32[1]{0}', space=sflag, size = 0x4, scoped, tag = 'scoped memory for chatbot_model_forward.1']
    #allocation5 [shape = 'u8[4096]{0}', space=vmem, size = 0x1000, scoped, tag = 'output window, operand 0, single buffered']
    %10 = vsyncpa [#allocation3], 0
    %11 = vsyncpa [#allocation4], 0
    // Predicated region
    $region2: #{chatbot_model_forward.1} parent=1 // pred_check
      _
    $region3: #{chatbot_model_forward.1} parent=1 // pred_check_branch
      %13 = sbr.rel (0) target = $region5
    $region4: #{chatbot_model_forward.1} parent=1 // pred_region
      _
    $region5: #{chatbot_model_forward.1} parent=1 // pred_fallthru
      _
    // Predicated region
    $region6: #{chatbot_model_forward.1} parent=1 // pred_check
      _
    $region7: #{chatbot_model_forward.1} parent=1 // pred_check_branch
      %15 = sbr.rel (0) target = $region9
    $region8: #{chatbot_model_forward.1} parent=1 // pred_region
      %17 = vsyncadd [#allocation3], 0
      %s18 = sshll.u32 %s1, 4
      %s19 = int_to_ptr.hbm [resolvable:$true] %s18
      %s20 = sshll.u32 [#allocation2], 4
      %s21 = int_to_ptr.vmem [resolvable:$true] %s20
      %26 = dma.hbm_to_vmem [thread:$0]  %s19, 14336, %s21, [#allocation3], 64, 64, 4
    $region9: #{chatbot_model_forward.1} parent=1 // pred_fallthru
      _
    // Predicated region
    $region10: #{chatbot_model_forward.1} parent=1 // pred_check
      _
    $region11: #{chatbot_model_forward.1} parent=1 // pred_check_branch
      %28 = sbr.rel (0) target = $region13
    $region12: #{chatbot_model_forward.1} parent=1 // pred_region
      _
    $region13: #{chatbot_model_forward.1} parent=1 // pred_fallthru
      _
    // Predicated region
    $region14: #{chatbot_model_forward.1} parent=1 // pred_check
      _
    $region15: #{chatbot_model_forward.1} parent=1 // pred_check_branch
      %30 = sbr.rel (0) target = $region17
    $region16: #{chatbot_model_forward.1} parent=1 // pred_region
      _
    $region17: #{chatbot_model_forward.1} parent=1 // pred_fallthru
      _
    // Predicated region
    $region18: #{chatbot_model_forward.1} parent=1 // pred_check
      _
    $region19: #{chatbot_model_forward.1} parent=1 // pred_check_branch
      %32 = sbr.rel (0) target = $region21
    $region20: #{chatbot_model_forward.1} parent=1 // pred_region
      _
    $region21: #{chatbot_model_forward.1} parent=1 // pred_fallthru
      _
    // Predicated region
    $region22: #{chatbot_model_forward.1} parent=1 // pred_check
      _
    $region23: #{chatbot_model_forward.1} parent=1 // pred_check_branch
      %34 = sbr.rel (0) target = $region25
    $region24: #{chatbot_model_forward.1} parent=1 // pred_region
      %36 = dma.done [#allocation3], 14336
    $region25: #{chatbot_model_forward.1} parent=1 // pred_fallthru
      _
    %v37 = vld [vmem:[%s0] sm:$0xff]
    %v38 = vld [vmem:[%s0 + $0x8] sm:$0xff]
    %v39 = vld [vmem:[%s0 + $0x10] sm:$0xff]
    %v40 = vld [vmem:[%s0 + $0x18] sm:$0xff]
    %v41 = vld [vmem:[%s0 + $0x20] sm:$0xff]
    %v42 = vld [vmem:[%s0 + $0x28] sm:$0xff]
    %v43 = vld [vmem:[%s0 + $0x30] sm:$0xff]
    %v44 = vld [vmem:[#allocation2] sm:$0xf]
    %v45 = vld [vmem:[#allocation2 + $0x4] sm:$0xf]
    %v46 = vld [vmem:[#allocation2 + $0x8] sm:$0xf]
    %v47 = vld [vmem:[#allocation2 + $0xc] sm:$0xf]
    %v48 = vld [vmem:[#allocation2 + $0x10] sm:$0xf]
    %v49 = vld [vmem:[#allocation2 + $0x14] sm:$0xf]
    %v50 = vld [vmem:[#allocation2 + $0x18] sm:$0xf]
    %v51 = vld [vmem:[#allocation2 + $0x1c] sm:$0xf]
    %v52 = vld [vmem:[#allocation2 + $0x20] sm:$0xf]
    %v53 = vld [vmem:[#allocation2 + $0x24] sm:$0xf]
    %v54 = vld [vmem:[#allocation2 + $0x28] sm:$0xf]
    %v55 = vld [vmem:[#allocation2 + $0x2c] sm:$0xf]
    %v56 = vld [vmem:[#allocation2 + $0x30] sm:$0xf]
    %v57 = vld [vmem:[#allocation2 + $0x34] sm:$0xf]
    %v58 = vld [vmem:[#allocation2 + $0x38] sm:$0xf]
    %v59 = vld [vmem:[#allocation2 + $0x3c] sm:$0xf]
    %v60 = vld [vmem:[#allocation2 + $0x40] sm:$0xf]
    %v61 = vld [vmem:[#allocation2 + $0x44] sm:$0xf]
    %v62 = vld [vmem:[#allocation2 + $0x48] sm:$0xf]
    %v63 = vld [vmem:[#allocation2 + $0x4c] sm:$0xf]
    %v64 = vld [vmem:[#allocation2 + $0x50] sm:$0xf]
    %v65 = vld [vmem:[#allocation2 + $0x54] sm:$0xf]
    %v66 = vld [vmem:[#allocation2 + $0x58] sm:$0xf]
    %v67 = vld [vmem:[#allocation2 + $0x5c] sm:$0xf]
    %v68 = vld [vmem:[#allocation2 + $0x60] sm:$0xf]
    %v69 = vld [vmem:[#allocation2 + $0x64] sm:$0xf]
    %v70 = vld [vmem:[#allocation2 + $0x68] sm:$0xf]
    %v71 = vld [vmem:[#allocation2 + $0x6c] sm:$0xf]
    %v72 = vld [vmem:[#allocation2 + $0x70] sm:$0xf]
    %v73 = vld [vmem:[#allocation2 + $0x74] sm:$0xf]
    %v74 = vld [vmem:[#allocation2 + $0x78] sm:$0xf]
    %v75 = vld [vmem:[#allocation2 + $0x7c] sm:$0xf]
    %v76 = vld [vmem:[#allocation2 + $0x80] sm:$0xf]
    %v77 = vld [vmem:[#allocation2 + $0x84] sm:$0xf]
    %v78 = vld [vmem:[#allocation2 + $0x88] sm:$0xf]
    %v79 = vld [vmem:[#allocation2 + $0x8c] sm:$0xf]
    %v80 = vld [vmem:[#allocation2 + $0x90] sm:$0xf]
    %v81 = vld [vmem:[#allocation2 + $0x94] sm:$0xf]
    %v82 = vld [vmem:[#allocation2 + $0x98] sm:$0xf]
    %v83 = vld [vmem:[#allocation2 + $0x9c] sm:$0xf]
    %v84 = vld [vmem:[#allocation2 + $0xa0] sm:$0xf]
    %v85 = vld [vmem:[#allocation2 + $0xa4] sm:$0xf]
    %v86 = vld [vmem:[#allocation2 + $0xa8] sm:$0xf]
    %v87 = vld [vmem:[#allocation2 + $0xac] sm:$0xf]
    %v88 = vld [vmem:[#allocation2 + $0xb0] sm:$0xf]
    %v89 = vld [vmem:[#allocation2 + $0xb4] sm:$0xf]
    %v90 = vld [vmem:[#allocation2 + $0xb8] sm:$0xf]
    %v91 = vld [vmem:[#allocation2 + $0xbc] sm:$0xf]
    %v92 = vld [vmem:[#allocation2 + $0xc0] sm:$0xf]
    %v93 = vld [vmem:[#allocation2 + $0xc4] sm:$0xf]
    %v94 = vld [vmem:[#allocation2 + $0xc8] sm:$0xf]
    %v95 = vld [vmem:[#allocation2 + $0xcc] sm:$0xf]
    %v96 = vld [vmem:[#allocation2 + $0xd0] sm:$0xf]
    %v97 = vld [vmem:[#allocation2 + $0xd4] sm:$0xf]
    %v98 = vld [vmem:[#allocation2 + $0xd8] sm:$0xf]
    %v99 = vld [vmem:[#allocation2 + $0xdc] sm:$0xf]
    %v100 = vld [vmem:[#allocation2 + $0xe0] sm:$0xf]
    %v101 = vld [vmem:[#allocation2 + $0xe4] sm:$0xf]
    %v102 = vld [vmem:[#allocation2 + $0xe8] sm:$0xf]
    %v103 = vld [vmem:[#allocation2 + $0xec] sm:$0xf]
    %v104 = vld [vmem:[#allocation2 + $0xf0] sm:$0xf]
    %v105 = vld [vmem:[#allocation2 + $0xf4] sm:$0xf]
    %v106 = vld [vmem:[#allocation2 + $0xf8] sm:$0xf]
    %v107 = vld [vmem:[#allocation2 + $0xfc] sm:$0xf]
    %v108 = vld [vmem:[#allocation2 + $0x100] sm:$0xf]
    %v109 = vld [vmem:[#allocation2 + $0x104] sm:$0xf]
    %v110 = vld [vmem:[#allocation2 + $0x108] sm:$0xf]
    %v111 = vld [vmem:[#allocation2 + $0x10c] sm:$0xf]
    %v112 = vld [vmem:[#allocation2 + $0x110] sm:$0xf]
    %v113 = vld [vmem:[#allocation2 + $0x114] sm:$0xf]
    %v114 = vld [vmem:[#allocation2 + $0x118] sm:$0xf]
    %v115 = vld [vmem:[#allocation2 + $0x11c] sm:$0xf]
    %v116 = vld [vmem:[#allocation2 + $0x120] sm:$0xf]
    %v117 = vld [vmem:[#allocation2 + $0x124] sm:$0xf]
    %v118 = vld [vmem:[#allocation2 + $0x128] sm:$0xf]
    %v119 = vld [vmem:[#allocation2 + $0x12c] sm:$0xf]
    %v120 = vld [vmem:[#allocation2 + $0x130] sm:$0xf]
    %v121 = vld [vmem:[#allocation2 + $0x134] sm:$0xf]
    %v122 = vld [vmem:[#allocation2 + $0x138] sm:$0xf]
    %v123 = vld [vmem:[#allocation2 + $0x13c] sm:$0xf]
    %v124 = vld [vmem:[#allocation2 + $0x140] sm:$0xf]
    %v125 = vld [vmem:[#allocation2 + $0x144] sm:$0xf]
    %v126 = vld [vmem:[#allocation2 + $0x148] sm:$0xf]
    %v127 = vld [vmem:[#allocation2 + $0x14c] sm:$0xf]
    %v128 = vld [vmem:[#allocation2 + $0x150] sm:$0xf]
    %v129 = vld [vmem:[#allocation2 + $0x154] sm:$0xf]
    %v130 = vld [vmem:[#allocation2 + $0x158] sm:$0xf]
    %v131 = vld [vmem:[#allocation2 + $0x15c] sm:$0xf]
    %v132 = vld [vmem:[#allocation2 + $0x160] sm:$0xf]
    %v133 = vld [vmem:[#allocation2 + $0x164] sm:$0xf]
    %v134 = vld [vmem:[#allocation2 + $0x168] sm:$0xf]
    %v135 = vld [vmem:[#allocation2 + $0x16c] sm:$0xf]
    %v136 = vld [vmem:[#allocation2 + $0x170] sm:$0xf]
    %v137 = vld [vmem:[#allocation2 + $0x174] sm:$0xf]
    %v138 = vld [vmem:[#allocation2 + $0x178] sm:$0xf]
    %v139 = vld [vmem:[#allocation2 + $0x17c] sm:$0xf]
    %v140 = vld [vmem:[#allocation2 + $0x180] sm:$0xf]
    %v141 = vld [vmem:[#allocation2 + $0x184] sm:$0xf]
    %v142 = vld [vmem:[#allocation2 + $0x188] sm:$0xf]
    %v143 = vld [vmem:[#allocation2 + $0x18c] sm:$0xf]
    %v144 = vld [vmem:[#allocation2 + $0x190] sm:$0xf]
    %v145 = vld [vmem:[#allocation2 + $0x194] sm:$0xf]
    %v146 = vld [vmem:[#allocation2 + $0x198] sm:$0xf]
    %v147 = vld [vmem:[#allocation2 + $0x19c] sm:$0xf]
    %v148 = vld [vmem:[#allocation2 + $0x1a0] sm:$0xf]
    %v149 = vld [vmem:[#allocation2 + $0x1a4] sm:$0xf]
    %v150 = vld [vmem:[#allocation2 + $0x1a8] sm:$0xf]
    %v151 = vld [vmem:[#allocation2 + $0x1ac] sm:$0xf]
    %v152 = vld [vmem:[#allocation2 + $0x1b0] sm:$0xf]
    %v153 = vld [vmem:[#allocation2 + $0x1b4] sm:$0xf]
    %v154 = vld [vmem:[#allocation2 + $0x1b8] sm:$0xf]
    %v155 = vld [vmem:[#allocation2 + $0x1bc] sm:$0xf]
    %v156 = vld [vmem:[#allocation2 + $0x1c0] sm:$0xf]
    %v157 = vld [vmem:[#allocation2 + $0x1c4] sm:$0xf]
    %v158 = vld [vmem:[#allocation2 + $0x1c8] sm:$0xf]
    %v159 = vld [vmem:[#allocation2 + $0x1cc] sm:$0xf]
    %v160 = vld [vmem:[#allocation2 + $0x1d0] sm:$0xf]
    %v161 = vld [vmem:[#allocation2 + $0x1d4] sm:$0xf]
    %v162 = vld [vmem:[#allocation2 + $0x1d8] sm:$0xf]
    %v163 = vld [vmem:[#allocation2 + $0x1dc] sm:$0xf]
    %v164 = vld [vmem:[#allocation2 + $0x1e0] sm:$0xf]
    %v165 = vld [vmem:[#allocation2 + $0x1e4] sm:$0xf]
    %v166 = vld [vmem:[#allocation2 + $0x1e8] sm:$0xf]
    %v167 = vld [vmem:[#allocation2 + $0x1ec] sm:$0xf]
    %v168 = vld [vmem:[#allocation2 + $0x1f0] sm:$0xf]
    %v169 = vld [vmem:[#allocation2 + $0x1f4] sm:$0xf]
    %v170 = vld [vmem:[#allocation2 + $0x1f8] sm:$0xf]
    %v171 = vld [vmem:[#allocation2 + $0x1fc] sm:$0xf]
    %v172 = vld [vmem:[#allocation2 + $0x200] sm:$0xf]
    %v173 = vld [vmem:[#allocation2 + $0x204] sm:$0xf]
    %v174 = vld [vmem:[#allocation2 + $0x208] sm:$0xf]
    %v175 = vld [vmem:[#allocation2 + $0x20c] sm:$0xf]
    %v176 = vld [vmem:[#allocation2 + $0x210] sm:$0xf]
    %v177 = vld [vmem:[#allocation2 + $0x214] sm:$0xf]
    %v178 = vld [vmem:[#allocation2 + $0x218] sm:$0xf]
    %v179 = vld [vmem:[#allocation2 + $0x21c] sm:$0xf]
    %v180 = vld [vmem:[#allocation2 + $0x220] sm:$0xf]
    %v181 = vld [vmem:[#allocation2 + $0x224] sm:$0xf]
    %v182 = vld [vmem:[#allocation2 + $0x228] sm:$0xf]
    %v183 = vld [vmem:[#allocation2 + $0x22c] sm:$0xf]
    %v184 = vld [vmem:[#allocation2 + $0x230] sm:$0xf]
    %v185 = vld [vmem:[#allocation2 + $0x234] sm:$0xf]
    %v186 = vld [vmem:[#allocation2 + $0x238] sm:$0xf]
    %v187 = vld [vmem:[#allocation2 + $0x23c] sm:$0xf]
    %v188 = vld [vmem:[#allocation2 + $0x240] sm:$0xf]
    %v189 = vld [vmem:[#allocation2 + $0x244] sm:$0xf]
    %v190 = vld [vmem:[#allocation2 + $0x248] sm:$0xf]
    %v191 = vld [vmem:[#allocation2 + $0x24c] sm:$0xf]
    %v192 = vld [vmem:[#allocation2 + $0x250] sm:$0xf]
    %v193 = vld [vmem:[#allocation2 + $0x254] sm:$0xf]
    %v194 = vld [vmem:[#allocation2 + $0x258] sm:$0xf]
    %v195 = vld [vmem:[#allocation2 + $0x25c] sm:$0xf]
    %v196 = vld [vmem:[#allocation2 + $0x260] sm:$0xf]
    %v197 = vld [vmem:[#allocation2 + $0x264] sm:$0xf]
    %v198 = vld [vmem:[#allocation2 + $0x268] sm:$0xf]
    %v199 = vld [vmem:[#allocation2 + $0x26c] sm:$0xf]
    %v200 = vld [vmem:[#allocation2 + $0x270] sm:$0xf]
    %v201 = vld [vmem:[#allocation2 + $0x274] sm:$0xf]
    %v202 = vld [vmem:[#allocation2 + $0x278] sm:$0xf]
    %v203 = vld [vmem:[#allocation2 + $0x27c] sm:$0xf]
    %v204 = vld [vmem:[#allocation2 + $0x280] sm:$0xf]
    %v205 = vld [vmem:[#allocation2 + $0x284] sm:$0xf]
    %v206 = vld [vmem:[#allocation2 + $0x288] sm:$0xf]
    %v207 = vld [vmem:[#allocation2 + $0x28c] sm:$0xf]
    %v208 = vld [vmem:[#allocation2 + $0x290] sm:$0xf]
    %v209 = vld [vmem:[#allocation2 + $0x294] sm:$0xf]
    %v210 = vld [vmem:[#allocation2 + $0x298] sm:$0xf]
    %v211 = vld [vmem:[#allocation2 + $0x29c] sm:$0xf]
    %v212 = vld [vmem:[#allocation2 + $0x2a0] sm:$0xf]
    %v213 = vld [vmem:[#allocation2 + $0x2a4] sm:$0xf]
    %v214 = vld [vmem:[#allocation2 + $0x2a8] sm:$0xf]
    %v215 = vld [vmem:[#allocation2 + $0x2ac] sm:$0xf]
    %v216 = vld [vmem:[#allocation2 + $0x2b0] sm:$0xf]
    %v217 = vld [vmem:[#allocation2 + $0x2b4] sm:$0xf]
    %v218 = vld [vmem:[#allocation2 + $0x2b8] sm:$0xf]
    %v219 = vld [vmem:[#allocation2 + $0x2bc] sm:$0xf]
    %v220 = vld [vmem:[#allocation2 + $0x2c0] sm:$0xf]
    %v221 = vld [vmem:[#allocation2 + $0x2c4] sm:$0xf]
    %v222 = vld [vmem:[#allocation2 + $0x2c8] sm:$0xf]
    %v223 = vld [vmem:[#allocation2 + $0x2cc] sm:$0xf]
    %v224 = vld [vmem:[#allocation2 + $0x2d0] sm:$0xf]
    %v225 = vld [vmem:[#allocation2 + $0x2d4] sm:$0xf]
    %v226 = vld [vmem:[#allocation2 + $0x2d8] sm:$0xf]
    %v227 = vld [vmem:[#allocation2 + $0x2dc] sm:$0xf]
    %v228 = vld [vmem:[#allocation2 + $0x2e0] sm:$0xf]
    %v229 = vld [vmem:[#allocation2 + $0x2e4] sm:$0xf]
    %v230 = vld [vmem:[#allocation2 + $0x2e8] sm:$0xf]
    %v231 = vld [vmem:[#allocation2 + $0x2ec] sm:$0xf]
    %v232 = vld [vmem:[#allocation2 + $0x2f0] sm:$0xf]
    %v233 = vld [vmem:[#allocation2 + $0x2f4] sm:$0xf]
    %v234 = vld [vmem:[#allocation2 + $0x2f8] sm:$0xf]
    %v235 = vld [vmem:[#allocation2 + $0x2fc] sm:$0xf]
    %v236 = vld [vmem:[#allocation2 + $0x300] sm:$0xf]
    %v237 = vld [vmem:[#allocation2 + $0x304] sm:$0xf]
    %v238 = vld [vmem:[#allocation2 + $0x308] sm:$0xf]
    %v239 = vld [vmem:[#allocation2 + $0x30c] sm:$0xf]
    %v240 = vld [vmem:[#allocation2 + $0x310] sm:$0xf]
    %v241 = vld [vmem:[#allocation2 + $0x314] sm:$0xf]
    %v242 = vld [vmem:[#allocation2 + $0x318] sm:$0xf]
    %v243 = vld [vmem:[#allocation2 + $0x31c] sm:$0xf]
    %v244 = vld [vmem:[#allocation2 + $0x320] sm:$0xf]
    %v245 = vld [vmem:[#allocation2 + $0x324] sm:$0xf]
    %v246 = vld [vmem:[#allocation2 + $0x328] sm:$0xf]
    %v247 = vld [vmem:[#allocation2 + $0x32c] sm:$0xf]
    %v248 = vld [vmem:[#allocation2 + $0x330] sm:$0xf]
    %v249 = vld [vmem:[#allocation2 + $0x334] sm:$0xf]
    %v250 = vld [vmem:[#allocation2 + $0x338] sm:$0xf]
    %v251 = vld [vmem:[#allocation2 + $0x33c] sm:$0xf]
    %v252 = vld [vmem:[#allocation2 + $0x340] sm:$0xf]
    %v253 = vld [vmem:[#allocation2 + $0x344] sm:$0xf]
    %v254 = vld [vmem:[#allocation2 + $0x348] sm:$0xf]
    %v255 = vld [vmem:[#allocation2 + $0x34c] sm:$0xf]
    %v256 = vld [vmem:[#allocation2 + $0x350] sm:$0xf]
    %v257 = vld [vmem:[#allocation2 + $0x354] sm:$0xf]
    %v258 = vld [vmem:[#allocation2 + $0x358] sm:$0xf]
    %v259 = vld [vmem:[#allocation2 + $0x35c] sm:$0xf]
    %v260 = vld [vmem:[#allocation2 + $0x360] sm:$0xf]
    %v261 = vld [vmem:[#allocation2 + $0x364] sm:$0xf]
    %v262 = vld [vmem:[#allocation2 + $0x368] sm:$0xf]
    %v263 = vld [vmem:[#allocation2 + $0x36c] sm:$0xf]
    %v264 = vld [vmem:[#allocation2 + $0x370] sm:$0xf]
    %v265 = vld [vmem:[#allocation2 + $0x374] sm:$0xf]
    %v266 = vld [vmem:[#allocation2 + $0x378] sm:$0xf]
    %v267 = vld [vmem:[#allocation2 + $0x37c] sm:$0xf]
    %v268 = vld [vmem:[%s2] sm:$0x1]
    %v270 = vperm.slane %v268, 0
    %v279 = vunpack.c.l.b16 %v37
    %v280 = vunpack.c.h.b16 %v37
    %v281 = vunpack.c.l.b16 %v38
    %v282 = vunpack.c.h.b16 %v38
    %v283 = vunpack.c.l.b16 %v39
    %v284 = vunpack.c.h.b16 %v39
    %v285 = vunpack.c.l.b16 %v40
    %v286 = vunpack.c.h.b16 %v40
    %v287 = vunpack.c.l.b16 %v41
    %v288 = vunpack.c.h.b16 %v41
    %v289 = vunpack.c.l.b16 %v42
    %v290 = vunpack.c.h.b16 %v42
    %v291 = vunpack.c.l.b16 %v43
    %v292 = vunpack.c.h.b16 %v43
    %v293 = vpack.c.b16 %v279, %v279
    %v294 = vpack.c.b16 %v280, %v280
    %v295 = vpack.c.b16 %v281, %v281
    %v296 = vpack.c.b16 %v282, %v282
    %v297 = vpack.c.b16 %v283, %v283
    %v298 = vpack.c.b16 %v284, %v284
    %v299 = vpack.c.b16 %v285, %v285
    %v300 = vpack.c.b16 %v286, %v286
    %v301 = vpack.c.b16 %v287, %v287
    %v302 = vpack.c.b16 %v288, %v288
    %v303 = vpack.c.b16 %v289, %v289
    %v304 = vpack.c.b16 %v290, %v290
    %v305 = vpack.c.b16 %v291, %v291
    %v306 = vpack.c.b16 %v292, %v292
    %v545 = vunpack.c.l.b16 %v44
    %v546 = vunpack.c.l.b16 %v45
    %v547 = vunpack.c.l.b16 %v46
    %v548 = vunpack.c.l.b16 %v47
    %v549 = vunpack.c.l.b16 %v48
    %v550 = vunpack.c.l.b16 %v49
    %v551 = vunpack.c.l.b16 %v50
    %v552 = vunpack.c.l.b16 %v51
    %v553 = vunpack.c.l.b16 %v52
    %v554 = vunpack.c.l.b16 %v53
    %v555 = vunpack.c.l.b16 %v54
    %v556 = vunpack.c.l.b16 %v55
    %v557 = vunpack.c.l.b16 %v56
    %v558 = vunpack.c.l.b16 %v57
    %v559 = vunpack.c.l.b16 %v58
    %v560 = vunpack.c.l.b16 %v59
    %v561 = vunpack.c.l.b16 %v60
    %v562 = vunpack.c.l.b16 %v61
    %v563 = vunpack.c.l.b16 %v62
    %v564 = vunpack.c.l.b16 %v63
    %v565 = vunpack.c.l.b16 %v64
    %v566 = vunpack.c.l.b16 %v65
    %v567 = vunpack.c.l.b16 %v66
    %v568 = vunpack.c.l.b16 %v67
    %v569 = vunpack.c.l.b16 %v68
    %v570 = vunpack.c.l.b16 %v69
    %v571 = vunpack.c.l.b16 %v70
    %v572 = vunpack.c.l.b16 %v71
    %v573 = vunpack.c.l.b16 %v72
    %v574 = vunpack.c.l.b16 %v73
    %v575 = vunpack.c.l.b16 %v74
    %v576 = vunpack.c.l.b16 %v75
    %v577 = vunpack.c.l.b16 %v76
    %v578 = vunpack.c.l.b16 %v77
    %v579 = vunpack.c.l.b16 %v78
    %v580 = vunpack.c.l.b16 %v79
    %v581 = vunpack.c.l.b16 %v80
    %v582 = vunpack.c.l.b16 %v81
    %v583 = vunpack.c.l.b16 %v82
    %v584 = vunpack.c.l.b16 %v83
    %v585 = vunpack.c.l.b16 %v84
    %v586 = vunpack.c.l.b16 %v85
    %v587 = vunpack.c.l.b16 %v86
    %v588 = vunpack.c.l.b16 %v87
    %v589 = vunpack.c.l.b16 %v88
    %v590 = vunpack.c.l.b16 %v89
    %v591 = vunpack.c.l.b16 %v90
    %v592 = vunpack.c.l.b16 %v91
    %v593 = vunpack.c.l.b16 %v92
    %v594 = vunpack.c.l.b16 %v93
    %v595 = vunpack.c.l.b16 %v94
    %v596 = vunpack.c.l.b16 %v95
    %v597 = vunpack.c.l.b16 %v96
    %v598 = vunpack.c.l.b16 %v97
    %v599 = vunpack.c.l.b16 %v98
    %v600 = vunpack.c.l.b16 %v99
    %v601 = vunpack.c.l.b16 %v100
    %v602 = vunpack.c.l.b16 %v101
    %v603 = vunpack.c.l.b16 %v102
    %v604 = vunpack.c.l.b16 %v103
    %v605 = vunpack.c.l.b16 %v104
    %v606 = vunpack.c.l.b16 %v105
    %v607 = vunpack.c.l.b16 %v106
    %v608 = vunpack.c.l.b16 %v107
    %v609 = vunpack.c.l.b16 %v108
    %v610 = vunpack.c.l.b16 %v109
    %v611 = vunpack.c.l.b16 %v110
    %v612 = vunpack.c.l.b16 %v111
    %v613 = vunpack.c.l.b16 %v112
    %v614 = vunpack.c.l.b16 %v113
    %v615 = vunpack.c.l.b16 %v114
    %v616 = vunpack.c.l.b16 %v115
    %v617 = vunpack.c.l.b16 %v116
    %v618 = vunpack.c.l.b16 %v117
    %v619 = vunpack.c.l.b16 %v118
    %v620 = vunpack.c.l.b16 %v119
    %v621 = vunpack.c.l.b16 %v120
    %v622 = vunpack.c.l.b16 %v121
    %v623 = vunpack.c.l.b16 %v122
    %v624 = vunpack.c.l.b16 %v123
    %v625 = vunpack.c.l.b16 %v124
    %v626 = vunpack.c.l.b16 %v125
    %v627 = vunpack.c.l.b16 %v126
    %v628 = vunpack.c.l.b16 %v127
    %v629 = vunpack.c.l.b16 %v128
    %v630 = vunpack.c.l.b16 %v129
    %v631 = vunpack.c.l.b16 %v130
    %v632 = vunpack.c.l.b16 %v131
    %v633 = vunpack.c.l.b16 %v132
    %v634 = vunpack.c.l.b16 %v133
    %v635 = vunpack.c.l.b16 %v134
    %v636 = vunpack.c.l.b16 %v135
    %v637 = vunpack.c.l.b16 %v136
    %v638 = vunpack.c.l.b16 %v137
    %v639 = vunpack.c.l.b16 %v138
    %v640 = vunpack.c.l.b16 %v139
    %v641 = vunpack.c.l.b16 %v140
    %v642 = vunpack.c.l.b16 %v141
    %v643 = vunpack.c.l.b16 %v142
    %v644 = vunpack.c.l.b16 %v143
    %v645 = vunpack.c.l.b16 %v144
    %v646 = vunpack.c.l.b16 %v145
    %v647 = vunpack.c.l.b16 %v146
    %v648 = vunpack.c.l.b16 %v147
    %v649 = vunpack.c.l.b16 %v148
    %v650 = vunpack.c.l.b16 %v149
    %v651 = vunpack.c.l.b16 %v150
    %v652 = vunpack.c.l.b16 %v151
    %v653 = vunpack.c.l.b16 %v152
    %v654 = vunpack.c.l.b16 %v153
    %v655 = vunpack.c.l.b16 %v154
    %v656 = vunpack.c.l.b16 %v155
    %v657 = vunpack.c.l.b16 %v156
    %v658 = vunpack.c.l.b16 %v157
    %v659 = vunpack.c.l.b16 %v158
    %v660 = vunpack.c.l.b16 %v159
    %v661 = vunpack.c.l.b16 %v160
    %v662 = vunpack.c.l.b16 %v161
    %v663 = vunpack.c.l.b16 %v162
    %v664 = vunpack.c.l.b16 %v163
    %v665 = vunpack.c.l.b16 %v164
    %v666 = vunpack.c.l.b16 %v165
    %v667 = vunpack.c.l.b16 %v166
    %v668 = vunpack.c.l.b16 %v167
    %v669 = vunpack.c.l.b16 %v168
    %v670 = vunpack.c.l.b16 %v169
    %v671 = vunpack.c.l.b16 %v170
    %v672 = vunpack.c.l.b16 %v171
    %v673 = vunpack.c.l.b16 %v172
    %v674 = vunpack.c.l.b16 %v173
    %v675 = vunpack.c.l.b16 %v174
    %v676 = vunpack.c.l.b16 %v175
    %v677 = vunpack.c.l.b16 %v176
    %v678 = vunpack.c.l.b16 %v177
    %v679 = vunpack.c.l.b16 %v178
    %v680 = vunpack.c.l.b16 %v179
    %v681 = vunpack.c.l.b16 %v180
    %v682 = vunpack.c.l.b16 %v181
    %v683 = vunpack.c.l.b16 %v182
    %v684 = vunpack.c.l.b16 %v183
    %v685 = vunpack.c.l.b16 %v184
    %v686 = vunpack.c.l.b16 %v185
    %v687 = vunpack.c.l.b16 %v186
    %v688 = vunpack.c.l.b16 %v187
    %v689 = vunpack.c.l.b16 %v188
    %v690 = vunpack.c.l.b16 %v189
    %v691 = vunpack.c.l.b16 %v190
    %v692 = vunpack.c.l.b16 %v191
    %v693 = vunpack.c.l.b16 %v192
    %v694 = vunpack.c.l.b16 %v193
    %v695 = vunpack.c.l.b16 %v194
    %v696 = vunpack.c.l.b16 %v195
    %v697 = vunpack.c.l.b16 %v196
    %v698 = vunpack.c.l.b16 %v197
    %v699 = vunpack.c.l.b16 %v198
    %v700 = vunpack.c.l.b16 %v199
    %v701 = vunpack.c.l.b16 %v200
    %v702 = vunpack.c.l.b16 %v201
    %v703 = vunpack.c.l.b16 %v202
    %v704 = vunpack.c.l.b16 %v203
    %v705 = vunpack.c.l.b16 %v204
    %v706 = vunpack.c.l.b16 %v205
    %v707 = vunpack.c.l.b16 %v206
    %v708 = vunpack.c.l.b16 %v207
    %v709 = vunpack.c.l.b16 %v208
    %v710 = vunpack.c.l.b16 %v209
    %v711 = vunpack.c.l.b16 %v210
    %v712 = vunpack.c.l.b16 %v211
    %v713 = vunpack.c.l.b16 %v212
    %v714 = vunpack.c.l.b16 %v213
    %v715 = vunpack.c.l.b16 %v214
    %v716 = vunpack.c.l.b16 %v215
    %v717 = vunpack.c.l.b16 %v216
    %v718 = vunpack.c.l.b16 %v217
    %v719 = vunpack.c.l.b16 %v218
    %v720 = vunpack.c.l.b16 %v219
    %v721 = vunpack.c.l.b16 %v220
    %v722 = vunpack.c.l.b16 %v221
    %v723 = vunpack.c.l.b16 %v222
    %v724 = vunpack.c.l.b16 %v223
    %v725 = vunpack.c.l.b16 %v224
    %v726 = vunpack.c.l.b16 %v225
    %v727 = vunpack.c.l.b16 %v226
    %v728 = vunpack.c.l.b16 %v227
    %v729 = vunpack.c.l.b16 %v228
    %v730 = vunpack.c.l.b16 %v229
    %v731 = vunpack.c.l.b16 %v230
    %v732 = vunpack.c.l.b16 %v231
    %v733 = vunpack.c.l.b16 %v232
    %v734 = vunpack.c.l.b16 %v233
    %v735 = vunpack.c.l.b16 %v234
    %v736 = vunpack.c.l.b16 %v235
    %v737 = vunpack.c.l.b16 %v236
    %v738 = vunpack.c.l.b16 %v237
    %v739 = vunpack.c.l.b16 %v238
    %v740 = vunpack.c.l.b16 %v239
    %v741 = vunpack.c.l.b16 %v240
    %v742 = vunpack.c.l.b16 %v241
    %v743 = vunpack.c.l.b16 %v242
    %v744 = vunpack.c.l.b16 %v243
    %v745 = vunpack.c.l.b16 %v244
    %v746 = vunpack.c.l.b16 %v245
    %v747 = vunpack.c.l.b16 %v246
    %v748 = vunpack.c.l.b16 %v247
    %v749 = vunpack.c.l.b16 %v248
    %v750 = vunpack.c.l.b16 %v249
    %v751 = vunpack.c.l.b16 %v250
    %v752 = vunpack.c.l.b16 %v251
    %v753 = vunpack.c.l.b16 %v252
    %v754 = vunpack.c.l.b16 %v253
    %v755 = vunpack.c.l.b16 %v254
    %v756 = vunpack.c.l.b16 %v255
    %v757 = vunpack.c.l.b16 %v256
    %v758 = vunpack.c.l.b16 %v257
    %v759 = vunpack.c.l.b16 %v258
    %v760 = vunpack.c.l.b16 %v259
    %v761 = vunpack.c.l.b16 %v260
    %v762 = vunpack.c.l.b16 %v261
    %v763 = vunpack.c.l.b16 %v262
    %v764 = vunpack.c.l.b16 %v263
    %v765 = vunpack.c.l.b16 %v264
    %v766 = vunpack.c.l.b16 %v265
    %v767 = vunpack.c.l.b16 %v266
    %v768 = vunpack.c.l.b16 %v267
    %v769 = vpack.c.b16 %v546, %v545
    %v770 = vpack.c.b16 %v548, %v547
    %v771 = vpack.c.b16 %v550, %v549
    %v772 = vpack.c.b16 %v552, %v551
    %v773 = vpack.c.b16 %v554, %v553
    %v774 = vpack.c.b16 %v556, %v555
    %v775 = vpack.c.b16 %v558, %v557
    %v776 = vpack.c.b16 %v560, %v559
    %v777 = vpack.c.b16 %v562, %v561
    %v778 = vpack.c.b16 %v564, %v563
    %v779 = vpack.c.b16 %v566, %v565
    %v780 = vpack.c.b16 %v568, %v567
    %v781 = vpack.c.b16 %v570, %v569
    %v782 = vpack.c.b16 %v572, %v571
    %v783 = vpack.c.b16 %v574, %v573
    %v784 = vpack.c.b16 %v576, %v575
    %v785 = vpack.c.b16 %v578, %v577
    %v786 = vpack.c.b16 %v580, %v579
    %v787 = vpack.c.b16 %v582, %v581
    %v788 = vpack.c.b16 %v584, %v583
    %v789 = vpack.c.b16 %v586, %v585
    %v790 = vpack.c.b16 %v588, %v587
    %v791 = vpack.c.b16 %v590, %v589
    %v792 = vpack.c.b16 %v592, %v591
    %v793 = vpack.c.b16 %v594, %v593
    %v794 = vpack.c.b16 %v596, %v595
    %v795 = vpack.c.b16 %v598, %v597
    %v796 = vpack.c.b16 %v600, %v599
    %v797 = vpack.c.b16 %v602, %v601
    %v798 = vpack.c.b16 %v604, %v603
    %v799 = vpack.c.b16 %v606, %v605
    %v800 = vpack.c.b16 %v608, %v607
    %v801 = vpack.c.b16 %v610, %v609
    %v802 = vpack.c.b16 %v612, %v611
    %v803 = vpack.c.b16 %v614, %v613
    %v804 = vpack.c.b16 %v616, %v615
    %v805 = vpack.c.b16 %v618, %v617
    %v806 = vpack.c.b16 %v620, %v619
    %v807 = vpack.c.b16 %v622, %v621
    %v808 = vpack.c.b16 %v624, %v623
    %v809 = vpack.c.b16 %v626, %v625
    %v810 = vpack.c.b16 %v628, %v627
    %v811 = vpack.c.b16 %v630, %v629
    %v812 = vpack.c.b16 %v632, %v631
    %v813 = vpack.c.b16 %v634, %v633
    %v814 = vpack.c.b16 %v636, %v635
    %v815 = vpack.c.b16 %v638, %v637
    %v816 = vpack.c.b16 %v640, %v639
    %v817 = vpack.c.b16 %v642, %v641
    %v818 = vpack.c.b16 %v644, %v643
    %v819 = vpack.c.b16 %v646, %v645
    %v820 = vpack.c.b16 %v648, %v647
    %v821 = vpack.c.b16 %v650, %v649
    %v822 = vpack.c.b16 %v652, %v651
    %v823 = vpack.c.b16 %v654, %v653
    %v824 = vpack.c.b16 %v656, %v655
    %v825 = vpack.c.b16 %v658, %v657
    %v826 = vpack.c.b16 %v660, %v659
    %v827 = vpack.c.b16 %v662, %v661
    %v828 = vpack.c.b16 %v664, %v663
    %v829 = vpack.c.b16 %v666, %v665
    %v830 = vpack.c.b16 %v668, %v667
    %v831 = vpack.c.b16 %v670, %v669
    %v832 = vpack.c.b16 %v672, %v671
    %v833 = vpack.c.b16 %v674, %v673
    %v834 = vpack.c.b16 %v676, %v675
    %v835 = vpack.c.b16 %v678, %v677
    %v836 = vpack.c.b16 %v680, %v679
    %v837 = vpack.c.b16 %v682, %v681
    %v838 = vpack.c.b16 %v684, %v683
    %v839 = vpack.c.b16 %v686, %v685
    %v840 = vpack.c.b16 %v688, %v687
    %v841 = vpack.c.b16 %v690, %v689
    %v842 = vpack.c.b16 %v692, %v691
    %v843 = vpack.c.b16 %v694, %v693
    %v844 = vpack.c.b16 %v696, %v695
    %v845 = vpack.c.b16 %v698, %v697
    %v846 = vpack.c.b16 %v700, %v699
    %v847 = vpack.c.b16 %v702, %v701
    %v848 = vpack.c.b16 %v704, %v703
    %v849 = vpack.c.b16 %v706, %v705
    %v850 = vpack.c.b16 %v708, %v707
    %v851 = vpack.c.b16 %v710, %v709
    %v852 = vpack.c.b16 %v712, %v711
    %v853 = vpack.c.b16 %v714, %v713
    %v854 = vpack.c.b16 %v716, %v715
    %v855 = vpack.c.b16 %v718, %v717
    %v856 = vpack.c.b16 %v720, %v719
    %v857 = vpack.c.b16 %v722, %v721
    %v858 = vpack.c.b16 %v724, %v723
    %v859 = vpack.c.b16 %v726, %v725
    %v860 = vpack.c.b16 %v728, %v727
    %v861 = vpack.c.b16 %v730, %v729
    %v862 = vpack.c.b16 %v732, %v731
    %v863 = vpack.c.b16 %v734, %v733
    %v864 = vpack.c.b16 %v736, %v735
    %v865 = vpack.c.b16 %v738, %v737
    %v866 = vpack.c.b16 %v740, %v739
    %v867 = vpack.c.b16 %v742, %v741
    %v868 = vpack.c.b16 %v744, %v743
    %v869 = vpack.c.b16 %v746, %v745
    %v870 = vpack.c.b16 %v748, %v747
    %v871 = vpack.c.b16 %v750, %v749
    %v872 = vpack.c.b16 %v752, %v751
    %v873 = vpack.c.b16 %v754, %v753
    %v874 = vpack.c.b16 %v756, %v755
    %v875 = vpack.c.b16 %v758, %v757
    %v876 = vpack.c.b16 %v760, %v759
    %v877 = vpack.c.b16 %v762, %v761
    %v878 = vpack.c.b16 %v764, %v763
    %v879 = vpack.c.b16 %v766, %v765
    %v880 = vpack.c.b16 %v768, %v767
    %993 = vmatpush.bf16.msra.mxu0 %v776
    %994 = vmatpush.bf16.msra.mxu0 %v775
    %995 = vmatpush.bf16.msra.mxu0 %v774
    %996 = vmatpush.bf16.msra.mxu0 %v773
    %997 = vmatpush.bf16.msra.mxu0 %v772
    %998 = vmatpush.bf16.msra.mxu0 %v771
    %999 = vmatpush.bf16.msra.mxu0 %v770
    %1000 = vmatpush.bf16.msra.mxu0 %v769
    %1001 = vmatmul.bf16.gmra.mxu0 %v293
    %v1002 = vpop.f32.mrf.mxu0
    %v1003 = vadd.f32 %v270, %v1002
    %v1004 = vpop.f32.mrf.mxu0
    %1005 = vdwg.mxu0
    %1006 = vmatpush.bf16.msra.mxu0 %v784
    %1007 = vmatpush.bf16.msra.mxu0 %v783
    %1008 = vmatpush.bf16.msra.mxu0 %v782
    %1009 = vmatpush.bf16.msra.mxu0 %v781
    %1010 = vmatpush.bf16.msra.mxu0 %v780
    %1011 = vmatpush.bf16.msra.mxu0 %v779
    %1012 = vmatpush.bf16.msra.mxu0 %v778
    %1013 = vmatpush.bf16.msra.mxu0 %v777
    %1014 = vmatmul.bf16.gmra.mxu0 %v294
    %v1015 = vpop.f32.mrf.mxu0
    %v1016 = vadd.f32 %v1003, %v1015
    %v1017 = vpop.f32.mrf.mxu0
    %1018 = vdwg.mxu0
    %1019 = vmatpush.bf16.msra.mxu0 %v792
    %1020 = vmatpush.bf16.msra.mxu0 %v791
    %1021 = vmatpush.bf16.msra.mxu0 %v790
    %1022 = vmatpush.bf16.msra.mxu0 %v789
    %1023 = vmatpush.bf16.msra.mxu0 %v788
    %1024 = vmatpush.bf16.msra.mxu0 %v787
    %1025 = vmatpush.bf16.msra.mxu0 %v786
    %1026 = vmatpush.bf16.msra.mxu0 %v785
    %1027 = vmatmul.bf16.gmra.mxu0 %v295
    %v1028 = vpop.f32.mrf.mxu0
    %v1029 = vadd.f32 %v1016, %v1028
    %v1030 = vpop.f32.mrf.mxu0
    %1031 = vdwg.mxu0
    %1032 = vmatpush.bf16.msra.mxu0 %v800
    %1033 = vmatpush.bf16.msra.mxu0 %v799
    %1034 = vmatpush.bf16.msra.mxu0 %v798
    %1035 = vmatpush.bf16.msra.mxu0 %v797
    %1036 = vmatpush.bf16.msra.mxu0 %v796
    %1037 = vmatpush.bf16.msra.mxu0 %v795
    %1038 = vmatpush.bf16.msra.mxu0 %v794
    %1039 = vmatpush.bf16.msra.mxu0 %v793
    %1040 = vmatmul.bf16.gmra.mxu0 %v296
    %v1041 = vpop.f32.mrf.mxu0
    %v1042 = vadd.f32 %v1029, %v1041
    %v1043 = vpop.f32.mrf.mxu0
    %1044 = vdwg.mxu0
    %1045 = vmatpush.bf16.msra.mxu0 %v808
    %1046 = vmatpush.bf16.msra.mxu0 %v807
    %1047 = vmatpush.bf16.msra.mxu0 %v806
    %1048 = vmatpush.bf16.msra.mxu0 %v805
    %1049 = vmatpush.bf16.msra.mxu0 %v804
    %1050 = vmatpush.bf16.msra.mxu0 %v803
    %1051 = vmatpush.bf16.msra.mxu0 %v802
    %1052 = vmatpush.bf16.msra.mxu0 %v801
    %1053 = vmatmul.bf16.gmra.mxu0 %v297
    %v1054 = vpop.f32.mrf.mxu0
    %v1055 = vadd.f32 %v1042, %v1054
    %v1056 = vpop.f32.mrf.mxu0
    %1057 = vdwg.mxu0
    %1058 = vmatpush.bf16.msra.mxu0 %v816
    %1059 = vmatpush.bf16.msra.mxu0 %v815
    %1060 = vmatpush.bf16.msra.mxu0 %v814
    %1061 = vmatpush.bf16.msra.mxu0 %v813
    %1062 = vmatpush.bf16.msra.mxu0 %v812
    %1063 = vmatpush.bf16.msra.mxu0 %v811
    %1064 = vmatpush.bf16.msra.mxu0 %v810
    %1065 = vmatpush.bf16.msra.mxu0 %v809
    %1066 = vmatmul.bf16.gmra.mxu0 %v298
    %v1067 = vpop.f32.mrf.mxu0
    %v1068 = vadd.f32 %v1055, %v1067
    %v1069 = vpop.f32.mrf.mxu0
    %1070 = vdwg.mxu0
    %1071 = vmatpush.bf16.msra.mxu0 %v824
    %1072 = vmatpush.bf16.msra.mxu0 %v823
    %1073 = vmatpush.bf16.msra.mxu0 %v822
    %1074 = vmatpush.bf16.msra.mxu0 %v821
    %1075 = vmatpush.bf16.msra.mxu0 %v820
    %1076 = vmatpush.bf16.msra.mxu0 %v819
    %1077 = vmatpush.bf16.msra.mxu0 %v818
    %1078 = vmatpush.bf16.msra.mxu0 %v817
    %1079 = vmatmul.bf16.gmra.mxu0 %v299
    %v1080 = vpop.f32.mrf.mxu0
    %v1081 = vadd.f32 %v1068, %v1080
    %v1082 = vpop.f32.mrf.mxu0
    %1083 = vdwg.mxu0
    %1084 = vmatpush.bf16.msra.mxu0 %v832
    %1085 = vmatpush.bf16.msra.mxu0 %v831
    %1086 = vmatpush.bf16.msra.mxu0 %v830
    %1087 = vmatpush.bf16.msra.mxu0 %v829
    %1088 = vmatpush.bf16.msra.mxu0 %v828
    %1089 = vmatpush.bf16.msra.mxu0 %v827
    %1090 = vmatpush.bf16.msra.mxu0 %v826
    %1091 = vmatpush.bf16.msra.mxu0 %v825
    %1092 = vmatmul.bf16.gmra.mxu0 %v300
    %v1093 = vpop.f32.mrf.mxu0
    %v1094 = vadd.f32 %v1081, %v1093
    %v1095 = vpop.f32.mrf.mxu0
    %1096 = vdwg.mxu0
    %1097 = vmatpush.bf16.msra.mxu0 %v840
    %1098 = vmatpush.bf16.msra.mxu0 %v839
    %1099 = vmatpush.bf16.msra.mxu0 %v838
    %1100 = vmatpush.bf16.msra.mxu0 %v837
    %1101 = vmatpush.bf16.msra.mxu0 %v836
    %1102 = vmatpush.bf16.msra.mxu0 %v835
    %1103 = vmatpush.bf16.msra.mxu0 %v834
    %1104 = vmatpush.bf16.msra.mxu0 %v833
    %1105 = vmatmul.bf16.gmra.mxu0 %v301
    %v1106 = vpop.f32.mrf.mxu0
    %v1107 = vadd.f32 %v1094, %v1106
    %v1108 = vpop.f32.mrf.mxu0
    %1109 = vdwg.mxu0
    %1110 = vmatpush.bf16.msra.mxu0 %v848
    %1111 = vmatpush.bf16.msra.mxu0 %v847
    %1112 = vmatpush.bf16.msra.mxu0 %v846
    %1113 = vmatpush.bf16.msra.mxu0 %v845
    %1114 = vmatpush.bf16.msra.mxu0 %v844
    %1115 = vmatpush.bf16.msra.mxu0 %v843
    %1116 = vmatpush.bf16.msra.mxu0 %v842
    %1117 = vmatpush.bf16.msra.mxu0 %v841
    %1118 = vmatmul.bf16.gmra.mxu0 %v302
    %v1119 = vpop.f32.mrf.mxu0
    %v1120 = vadd.f32 %v1107, %v1119
    %v1121 = vpop.f32.mrf.mxu0
    %1122 = vdwg.mxu0
    %1123 = vmatpush.bf16.msra.mxu0 %v856
    %1124 = vmatpush.bf16.msra.mxu0 %v855
    %1125 = vmatpush.bf16.msra.mxu0 %v854
    %1126 = vmatpush.bf16.msra.mxu0 %v853
    %1127 = vmatpush.bf16.msra.mxu0 %v852
    %1128 = vmatpush.bf16.msra.mxu0 %v851
    %1129 = vmatpush.bf16.msra.mxu0 %v850
    %1130 = vmatpush.bf16.msra.mxu0 %v849
    %1131 = vmatmul.bf16.gmra.mxu0 %v303
    %v1132 = vpop.f32.mrf.mxu0
    %v1133 = vadd.f32 %v1120, %v1132
    %v1134 = vpop.f32.mrf.mxu0
    %1135 = vdwg.mxu0
    %1136 = vmatpush.bf16.msra.mxu0 %v864
    %1137 = vmatpush.bf16.msra.mxu0 %v863
    %1138 = vmatpush.bf16.msra.mxu0 %v862
    %1139 = vmatpush.bf16.msra.mxu0 %v861
    %1140 = vmatpush.bf16.msra.mxu0 %v860
    %1141 = vmatpush.bf16.msra.mxu0 %v859
    %1142 = vmatpush.bf16.msra.mxu0 %v858
    %1143 = vmatpush.bf16.msra.mxu0 %v857
    %1144 = vmatmul.bf16.gmra.mxu0 %v304
    %v1145 = vpop.f32.mrf.mxu0
    %v1146 = vadd.f32 %v1133, %v1145
    %v1147 = vpop.f32.mrf.mxu0
    %1148 = vdwg.mxu0
    %1149 = vmatpush.bf16.msra.mxu0 %v872
    %1150 = vmatpush.bf16.msra.mxu0 %v871
    %1151 = vmatpush.bf16.msra.mxu0 %v870
    %1152 = vmatpush.bf16.msra.mxu0 %v869
    %1153 = vmatpush.bf16.msra.mxu0 %v868
    %1154 = vmatpush.bf16.msra.mxu0 %v867
    %1155 = vmatpush.bf16.msra.mxu0 %v866
    %1156 = vmatpush.bf16.msra.mxu0 %v865
    %1157 = vmatmul.bf16.gmra.mxu0 %v305
    %v1158 = vpop.f32.mrf.mxu0
    %v1159 = vadd.f32 %v1146, %v1158
    %v1160 = vpop.f32.mrf.mxu0
    %1161 = vdwg.mxu0
    %1162 = vmatpush.bf16.msra.mxu0 %v880
    %1163 = vmatpush.bf16.msra.mxu0 %v879
    %1164 = vmatpush.bf16.msra.mxu0 %v878
    %1165 = vmatpush.bf16.msra.mxu0 %v877
    %1166 = vmatpush.bf16.msra.mxu0 %v876
    %1167 = vmatpush.bf16.msra.mxu0 %v875
    %1168 = vmatpush.bf16.msra.mxu0 %v874
    %1169 = vmatpush.bf16.msra.mxu0 %v873
    %1170 = vmatmul.bf16.gmra.mxu0 %v306
    %v1171 = vpop.f32.mrf.mxu0
    %v1172 = vadd.f32 %v1159, %v1171
    %v1173 = vpop.f32.mrf.mxu0
    %1174 = vdwg.mxu0
    %v1175 = vmax.f32 %v1172, 0.0
    %v1176 = vld [vmem:[%s3] sm:$0xff]
    %v1177 = vld [vmem:[%s3 + $0x8] sm:$0xff]
    %v1178 = vld [vmem:[%s3 + $0x10] sm:$0xff]
    %v1179 = vld [vmem:[%s3 + $0x18] sm:$0xff]
    %v1180 = vld [vmem:[%s3 + $0x20] sm:$0xff]
    %v1181 = vld [vmem:[%s3 + $0x28] sm:$0xff]
    %v1182 = vld [vmem:[%s3 + $0x30] sm:$0xff]
    %v1183 = vld [vmem:[%s3 + $0x38] sm:$0xff]
    %v1184 = vld [vmem:[%s3 + $0x40] sm:$0xff]
    %v1185 = vld [vmem:[%s3 + $0x48] sm:$0xff]
    %v1186 = vld [vmem:[%s3 + $0x50] sm:$0xff]
    %v1187 = vld [vmem:[%s3 + $0x58] sm:$0xff]
    %v1188 = vld [vmem:[%s3 + $0x60] sm:$0xff]
    %v1189 = vld [vmem:[%s3 + $0x68] sm:$0xff]
    %v1190 = vld [vmem:[%s3 + $0x70] sm:$0xff]
    %v1191 = vld [vmem:[%s3 + $0x78] sm:$0xff]
    %v1192 = vld [vmem:[%s4] sm:$0x1]
    %v1194 = vperm.slane %v1192, 0
    %1196 = vmatpush.msra.mxu0 %v1191
    %1197 = vmatpush.msra.mxu0 %v1190
    %1198 = vmatpush.msra.mxu0 %v1189
    %1199 = vmatpush.msra.mxu0 %v1188
    %1200 = vmatpush.msra.mxu0 %v1187
    %1201 = vmatpush.msra.mxu0 %v1186
    %1202 = vmatpush.msra.mxu0 %v1185
    %1203 = vmatpush.msra.mxu0 %v1184
    %1204 = vmatpush.msra.mxu0 %v1183
    %1205 = vmatpush.msra.mxu0 %v1182
    %1206 = vmatpush.msra.mxu0 %v1181
    %1207 = vmatpush.msra.mxu0 %v1180
    %1208 = vmatpush.msra.mxu0 %v1179
    %1209 = vmatpush.msra.mxu0 %v1178
    %1210 = vmatpush.msra.mxu0 %v1177
    %1211 = vmatpush.msra.mxu0 %v1176
    %1212 = vmatmul.f32.gmra.mxu0 %v1175
    %v1213 = vpop.f32.mrf.mxu0
    %v1214 = vadd.f32 %v1194, %v1213
    %1215 = vdwg.mxu0
    %1216 = vst [vmem:[#allocation5] sm:$0xff] %v1214
    // Predicated region
    $region26: #{chatbot_model_forward.1} parent=1 // pred_check
      _
    $region27: #{chatbot_model_forward.1} parent=1 // pred_check_branch
      %1218 = sbr.rel (0) target = $region29
    $region28: #{chatbot_model_forward.1} parent=1 // pred_region
      %1220 = vsyncadd [#allocation4], 0
      %s1222 = sshll.u32 [#allocation5], 4
      %s1223 = int_to_ptr.vmem [resolvable:$true] %s1222
      %s1224 = sshll.u32 %s5, 4
      %s1225 = int_to_ptr.hbm [resolvable:$true] %s1224
      %1227 = dma.vmem_to_hbm [thread:$0]  %s1223, 128, %s1225, [#allocation4]
    $region29: #{chatbot_model_forward.1} parent=1 // pred_fallthru
      _
    // Predicated region
    $region30: #{chatbot_model_forward.1} parent=1 // pred_check
      _
    $region31: #{chatbot_model_forward.1} parent=1 // pred_check_branch
      %1229 = sbr.rel (0) target = $region33
    $region32: #{chatbot_model_forward.1} parent=1 // pred_region
      %1231 = dma.done [#allocation4], 128
    $region33: #{chatbot_model_forward.1} parent=1 // pred_fallthru
      _
    %1232 = vsyncpa [#allocation3], 1
    %1233 = vsyncpa [#allocation4], 1

</llo_original>
